<compile_context>
chip_gen: v5e
topology: v5e:2x2
jax: 0.10.0
libtpu: 0.0.40
codegen_flags: <defaults>
</compile_context>

<pallas_src>
import math
import jax
import jax.numpy as jnp
from jax.experimental import pallas as pl
from jax.experimental.pallas import tpu as pltpu


def _round_up(n, m):
    return ((n + m - 1) // m) * m


def mlp_kernel(x_ref, w1_ref, b1_ref, w2_ref, b2_ref, w3_ref, b3_ref, o_ref):
    # fc1 + ReLU  (MXU matmul, f32 accumulate)
    h1 = jnp.dot(x_ref[...], w1_ref[...], preferred_element_type=jnp.float32)
    h1 = jnp.maximum(h1 + b1_ref[...], 0.0)

    # fc2 + ReLU
    h2 = jnp.dot(h1, w2_ref[...], preferred_element_type=jnp.float32)
    h2 = jnp.maximum(h2 + b2_ref[...], 0.0)

    # F.dropout(x, training=self.training): inference-mode identity.
    # TODO(synk): training-mode dropout would use pltpu.prng_seed +
    #             pltpu.stateful_bernoulli(p=0.5) with a 1/(1-p) rescale.

    # fc3: an N=1 MXU matmul would use 1/256 of the MXU columns, so compute it
    # on the VPU/XLU instead: broadcast the (1, 32) weight row, multiply, and
    # lane-reduce. keepdims keeps the (TB, 1) column layout of the output ref.
    z = jnp.sum(h2 * w3_ref[...], axis=-1, keepdims=True) + b3_ref[...]

    # sigmoid: exp runs on the EUP slot; exact divide keeps the result within
    # ~1e-7 of the f32 reference (pl.reciprocal(approx=True) would be cheaper
    # but looser than the 1e-5 check below).
    o_ref[...] = 1.0 / (1.0 + jnp.exp(-z))


def neural_network_forward(x, params, *, tile_b=None):
    """x: [B, 9] float32 -> [B, 1] float32 (inference forward pass)."""
    w1, b1, w2, b2, w3, b3 = params
    B, F = x.shape
    H1 = w1.shape[1]          # 128
    H2 = w2.shape[1]          # 32

    # Batch tile: large enough to amortize the ~0.35us/step grid overhead,
    # small enough that (2x double-buffered x tile + h1/h2 intermediates +
    # resident weights) stays far below scoped VMEM on every generation
    # (v7x only has 64 MiB physical / 32 MiB scoped VMEM).
    if tile_b is None:
        tile_b = 512 if B >= 512 else _round_up(B, 8)
    tile_b = max(8, _round_up(tile_b, 8))
    B_pad = _round_up(B, tile_b)
    if B_pad != B:
        x = jnp.concatenate([x, jnp.zeros((B_pad - B, F), x.dtype)], axis=0)

    # fc3 weight as a (1, H2) row so the kernel can do a VPU multiply-reduce.
    w3_row = w3.reshape(1, H2)
    b3_2d = b3.reshape(1, 1)

    grid = (B_pad // tile_b,)

    def resident(shape):
        # Whole array in VMEM, same block for every grid step (no re-fetch).
        return pl.BlockSpec(shape, lambda i: (0,) * len(shape))

    out = pl.pallas_call(
        mlp_kernel,
        out_shape=jax.ShapeDtypeStruct((B_pad, 1), jnp.float32),
        grid=grid,
        in_specs=[
            pl.BlockSpec((tile_b, F), lambda i: (i, 0)),   # x: tiled over batch
            resident((F, H1)), resident((1, H1)),          # fc1
            resident((H1, H2)), resident((1, H2)),         # fc2
            resident((1, H2)), resident((1, 1)),           # fc3 row + bias
        ],
        out_specs=pl.BlockSpec((tile_b, 1), lambda i: (i, 0)),
        compiler_params=pltpu.CompilerParams(
            # batch tiles are independent -> shard across v7x's 2 TensorCores
            dimension_semantics=("parallel",),
            # <=32 MiB fits the scoped-VMEM default on v5e/v6e/v7x
            vmem_limit_bytes=32 << 20,
        ),
    )(x, w1, b1, w2, b2, w3_row, b3_2d)

    return out[:B]


def init_params(key):
    """Deterministic init mimicking PyTorch nn.Linear default
    (uniform(-1/sqrt(fan_in), 1/sqrt(fan_in)))."""
    def linear(key, fan_in, fan_out):
        kw, kb = jax.random.split(key)
        bound = 1.0 / math.sqrt(fan_in)
        w = jax.random.uniform(kw, (fan_in, fan_out), jnp.float32, -bound, bound)
        b = jax.random.uniform(kb, (1, fan_out), jnp.float32, -bound, bound)
        return w, b

    k1, k2, k3 = jax.random.split(key, 3)
    w1, b1 = linear(k1, 9, 128)
    w2, b2 = linear(k2, 128, 32)
    w3, b3 = linear(k3, 32, 1)
    return (w1, b1, w2, b2, w3, b3)


if __name__ == "__main__":
    key = jax.random.PRNGKey(0)
    kp, kx1, kx2 = jax.random.split(key, 3)

    params = init_params(kp)
    w1, b1, w2, b2, w3, b3 = params

    def reference(x):
        h1 = jnp.maximum(x @ w1 + b1, 0.0)
        h2 = jnp.maximum(h1 @ w2 + b2, 0.0)
        return jax.nn.sigmoid(h2 @ w3 + b3)

    # Small shape consistent with the module: batch=8, features=9.
    x_small = jax.random.normal(kx1, (8, 9), dtype=jnp.float32)
    out_small = jax.block_until_ready(neural_network_forward(x_small, params))
    assert out_small.shape == (8, 1)
    assert jnp.allclose(out_small, reference(x_small), atol=1e-5), "mismatch (B=8)"

    # Non-multiple batch with a forced small tile: grid=(3,), exercises the
    # batch pipeline, resident weights, and pad/slice path.
    x_multi = jax.random.normal(kx2, (40, 9), dtype=jnp.float32)
    out_multi = jax.block_until_ready(
        neural_network_forward(x_multi, params, tile_b=16))
    assert out_multi.shape == (40, 1)
    assert jnp.allclose(out_multi, reference(x_multi), atol=1e-5), "mismatch (B=40)"

    print("KERNEL_OK")
</pallas_src>

<mosaic_0001>
module attributes {stable_mosaic.version = 11 : i64} {
  func.func @mlp_kernel(%arg0: i32, %arg1: memref<8x9xf32, #tpu.memory_space<vmem>>, %arg2: memref<9x128xf32, #tpu.memory_space<vmem>>, %arg3: memref<1x128xf32, #tpu.memory_space<vmem>>, %arg4: memref<128x32xf32, #tpu.memory_space<vmem>>, %arg5: memref<1x32xf32, #tpu.memory_space<vmem>>, %arg6: memref<1x32xf32, #tpu.memory_space<vmem>>, %arg7: memref<1x1xf32, #tpu.memory_space<vmem>>, %arg8: memref<8x1xf32, #tpu.memory_space<vmem>>) attributes {dimension_semantics = [#tpu.dimension_semantics<parallel>], iteration_bounds = array<i64: 1>, scalar_prefetch = 0 : i64, scratch_operands = 0 : i64, tpu.core_type = #tpu.core_type<tc>, window_params = [{transform_indices = @transform_0, window_bounds = array<i64: 8, 9>}, {pipeline_mode = #tpu.pipeline_mode<synchronous>, transform_indices = @transform_1, window_bounds = array<i64: 9, 128>}, {pipeline_mode = #tpu.pipeline_mode<synchronous>, transform_indices = @transform_2, window_bounds = array<i64: 1, 128>}, {pipeline_mode = #tpu.pipeline_mode<synchronous>, transform_indices = @transform_3, window_bounds = array<i64: 128, 32>}, {pipeline_mode = #tpu.pipeline_mode<synchronous>, transform_indices = @transform_4, window_bounds = array<i64: 1, 32>}, {pipeline_mode = #tpu.pipeline_mode<synchronous>, transform_indices = @transform_5, window_bounds = array<i64: 1, 32>}, {pipeline_mode = #tpu.pipeline_mode<synchronous>, transform_indices = @transform_6, window_bounds = array<i64: 1, 1>}, {transform_indices = @transform_7, window_bounds = array<i64: 8, 1>}]} {
    %c0 = arith.constant 0 : index
    %c0_0 = arith.constant 0 : index
    %0 = vector.load %arg1[%c0, %c0_0] : memref<8x9xf32, #tpu.memory_space<vmem>>, vector<8x9xf32>
    %c0_1 = arith.constant 0 : index
    %c0_2 = arith.constant 0 : index
    %1 = vector.load %arg2[%c0_1, %c0_2] : memref<9x128xf32, #tpu.memory_space<vmem>>, vector<9x128xf32>
    %cst = arith.constant dense<0.000000e+00> : vector<8x128xf32>
    %2 = tpu.matmul %0, %1, %cst {dimension_numbers = #tpu.dot_dimension_numbers<[1], [0], [0], [1], [0, 0, 1, 1], [], []>} : vector<8x9xf32>, vector<9x128xf32>, vector<8x128xf32> -> vector<8x128xf32>
    %c0_3 = arith.constant 0 : index
    %c0_4 = arith.constant 0 : index
    %3 = vector.load %arg3[%c0_3, %c0_4] : memref<1x128xf32, #tpu.memory_space<vmem>>, vector<1x128xf32>
    %4 = vector.broadcast %3 : vector<1x128xf32> to vector<8x128xf32>
    %5 = arith.addf %2, %4 : vector<8x128xf32>
    %cst_5 = arith.constant 0.000000e+00 : f32
    %6 = vector.broadcast %cst_5 : f32 to vector<8x128xf32>
    %7 = arith.maximumf %5, %6 : vector<8x128xf32>
    %c0_6 = arith.constant 0 : index
    %c0_7 = arith.constant 0 : index
    %8 = vector.load %arg4[%c0_6, %c0_7] : memref<128x32xf32, #tpu.memory_space<vmem>>, vector<128x32xf32>
    %cst_8 = arith.constant dense<0.000000e+00> : vector<8x32xf32>
    %9 = tpu.matmul %7, %8, %cst_8 {dimension_numbers = #tpu.dot_dimension_numbers<[1], [0], [0], [1], [0, 0, 1, 1], [], []>} : vector<8x128xf32>, vector<128x32xf32>, vector<8x32xf32> -> vector<8x32xf32>
    %c0_9 = arith.constant 0 : index
    %c0_10 = arith.constant 0 : index
    %10 = vector.load %arg5[%c0_9, %c0_10] : memref<1x32xf32, #tpu.memory_space<vmem>>, vector<1x32xf32>
    %11 = vector.broadcast %10 : vector<1x32xf32> to vector<8x32xf32>
    %12 = arith.addf %9, %11 : vector<8x32xf32>
    %cst_11 = arith.constant 0.000000e+00 : f32
    %13 = vector.broadcast %cst_11 : f32 to vector<8x32xf32>
    %14 = arith.maximumf %12, %13 : vector<8x32xf32>
    %c0_12 = arith.constant 0 : index
    %c0_13 = arith.constant 0 : index
    %15 = vector.load %arg6[%c0_12, %c0_13] : memref<1x32xf32, #tpu.memory_space<vmem>>, vector<1x32xf32>
    %16 = vector.broadcast %15 : vector<1x32xf32> to vector<8x32xf32>
    %17 = arith.mulf %14, %16 : vector<8x32xf32>
    %cst_14 = arith.constant dense<0.000000e+00> : vector<8xf32>
    %18 = vector.multi_reduction <add>, %17, %cst_14 [1] : vector<8x32xf32> to vector<8xf32>
    %19 = vector.shape_cast %18 : vector<8xf32> to vector<8x1xf32>
    %c0_15 = arith.constant 0 : index
    %c0_16 = arith.constant 0 : index
    %20 = vector.load %arg7[%c0_15, %c0_16] : memref<1x1xf32, #tpu.memory_space<vmem>>, vector<1x1xf32>
    %21 = vector.broadcast %20 : vector<1x1xf32> to vector<8x1xf32>
    %22 = arith.addf %19, %21 : vector<8x1xf32>
    %cst_17 = arith.constant 0.000000e+00 : f32
    %23 = vector.broadcast %cst_17 : f32 to vector<8x1xf32>
    %24 = arith.subf %23, %22 : vector<8x1xf32>
    %25 = math.exp %24 : vector<8x1xf32>
    %cst_18 = arith.constant 1.000000e+00 : f32
    %26 = vector.broadcast %cst_18 : f32 to vector<8x1xf32>
    %27 = arith.addf %26, %25 : vector<8x1xf32>
    %cst_19 = arith.constant 1.000000e+00 : f32
    %28 = vector.broadcast %cst_19 : f32 to vector<8x1xf32>
    %29 = arith.divf %28, %27 : vector<8x1xf32>
    %c0_20 = arith.constant 0 : index
    %c0_21 = arith.constant 0 : index
    %30 = vector.load %arg8[%c0_20, %c0_21] : memref<8x1xf32, #tpu.memory_space<vmem>>, vector<8x1xf32>
    tpu.vector_store %arg8[%c0_20, %c0_21], %29 {strides = array<i32>} : memref<8x1xf32, #tpu.memory_space<vmem>>, vector<8x1xf32>,
    return
  }
  func.func @transform_0(%arg0: i32) -> (i32, i32) {
    %c0_i32 = arith.constant 0 : i32
    %c0_i32_0 = arith.constant 0 : i32
    return %arg0, %c0_i32 : i32, i32
  }
  func.func @transform_1(%arg0: i32) -> (i32, i32) {
    %c0_i32 = arith.constant 0 : i32
    %c0_i32_0 = arith.constant 0 : i32
    %c0_i32_1 = arith.constant 0 : i32
    return %c0_i32, %c0_i32_0 : i32, i32
  }
  func.func @transform_2(%arg0: i32) -> (i32, i32) {
    %c0_i32 = arith.constant 0 : i32
    %c0_i32_0 = arith.constant 0 : i32
    %c0_i32_1 = arith.constant 0 : i32
    return %c0_i32, %c0_i32_0 : i32, i32
  }
  func.func @transform_3(%arg0: i32) -> (i32, i32) {
    %c0_i32 = arith.constant 0 : i32
    %c0_i32_0 = arith.constant 0 : i32
    %c0_i32_1 = arith.constant 0 : i32
    return %c0_i32, %c0_i32_0 : i32, i32
  }
  func.func @transform_4(%arg0: i32) -> (i32, i32) {
    %c0_i32 = arith.constant 0 : i32
    %c0_i32_0 = arith.constant 0 : i32
    %c0_i32_1 = arith.constant 0 : i32
    return %c0_i32, %c0_i32_0 : i32, i32
  }
  func.func @transform_5(%arg0: i32) -> (i32, i32) {
    %c0_i32 = arith.constant 0 : i32
    %c0_i32_0 = arith.constant 0 : i32
    %c0_i32_1 = arith.constant 0 : i32
    return %c0_i32, %c0_i32_0 : i32, i32
  }
  func.func @transform_6(%arg0: i32) -> (i32, i32) {
    %c0_i32 = arith.constant 0 : i32
    %c0_i32_0 = arith.constant 0 : i32
    %c0_i32_1 = arith.constant 0 : i32
    return %c0_i32, %c0_i32_0 : i32, i32
  }
  func.func @transform_7(%arg0: i32) -> (i32, i32) {
    %c0_i32 = arith.constant 0 : i32
    %c0_i32_0 = arith.constant 0 : i32
    return %arg0, %c0_i32 : i32, i32
  }
}

</mosaic_0001>

<llo_original>
// kernel: tpu_custom_call.1
$region0: #{tpu_custom_call.1}
  #allocation0 [shape = 'u32[]', space=smem, size = 0x4, offset = 0x4, fixed_abs, tag = 'smem constant byte address 0x4 - core index']
  #allocation1 [shape = 'u32[72,128]{1,0:T(1,128)}', space=vmem, size = 0x9000, scoped, tag = 'internal scratch']
  #allocation2 [shape = 'f32[1,1]{1,0:T(1,128)S(1)}', space=vmem, size = 0x200, scoped, tag = 'scoped memory for tpu_custom_call.1']
  %s0 = inlined_call_operand.vmem [shape: f32[8,9], index: 0, kind: input, shape index: {}]
  %s1 = inlined_call_operand.vmem [shape: f32[9,128], index: 1, kind: input, shape index: {}]
  %s2 = inlined_call_operand.vmem [shape: f32[1,128], index: 2, kind: input, shape index: {}]
  %s3 = inlined_call_operand.vmem [shape: f32[128,32], index: 3, kind: input, shape index: {}]
  %s4 = inlined_call_operand.vmem [shape: f32[1,32], index: 4, kind: input, shape index: {}]
  %s5 = inlined_call_operand.vmem [shape: f32[1,32], index: 5, kind: input, shape index: {}]
  %s6 = inlined_call_operand.<no memory space> [shape: f32[1,1], index: 6, kind: input, shape index: {}]
  %s7 = inlined_call_operand.vmem [shape: f32[8,1], index: 7, kind: output, shape index: {}]
  %s8 = sld [smem:[#allocation0]]
  $region38: #{tpu_custom_call.1} parent=0
    _
  %s10 = ssub.s32 1, %s8
  %s11 = scalar_select 0, %s10, %s8
  %v12 = vstv %s6
  %13 = vst [vmem:[#allocation2] sm:$0x1] %v12
  // Predicated region
  $region2: #{tpu_custom_call.1} parent=0 // pred_check
    _
  $region3: #{tpu_custom_call.1} parent=0 // pred_check_branch
    %15 = sbr.rel (0) target = $region5
  $region4: #{tpu_custom_call.1} parent=0 // pred_region
    _
  $region5: #{tpu_custom_call.1} parent=0 // pred_fallthru
    _
  // Predicated region
  $region6: #{tpu_custom_call.1} parent=0 // pred_check
    _
  $region7: #{tpu_custom_call.1} parent=0 // pred_check_branch
    %17 = sbr.rel (0) target = $region9
  $region8: #{tpu_custom_call.1} parent=0 // pred_region
    _
  $region9: #{tpu_custom_call.1} parent=0 // pred_fallthru
    _
  // Predicated region
  $region10: #{tpu_custom_call.1} parent=0 // pred_check
    _
  $region11: #{tpu_custom_call.1} parent=0 // pred_check_branch
    %19 = sbr.rel (0) target = $region13
  $region12: #{tpu_custom_call.1} parent=0 // pred_region
    _
  $region13: #{tpu_custom_call.1} parent=0 // pred_fallthru
    _
  // Predicated region
  $region14: #{tpu_custom_call.1} parent=0 // pred_check
    _
  $region15: #{tpu_custom_call.1} parent=0 // pred_check_branch
    %21 = sbr.rel (0) target = $region17
  $region16: #{tpu_custom_call.1} parent=0 // pred_region
    _
  $region17: #{tpu_custom_call.1} parent=0 // pred_fallthru
    _
  // Predicated region
  $region18: #{tpu_custom_call.1} parent=0 // pred_check
    _
  $region19: #{tpu_custom_call.1} parent=0 // pred_check_branch
    %23 = sbr.rel (0) target = $region21
  $region20: #{tpu_custom_call.1} parent=0 // pred_region
    _
  $region21: #{tpu_custom_call.1} parent=0 // pred_fallthru
    _
  // Predicated region
  $region22: #{tpu_custom_call.1} parent=0 // pred_check
    _
  $region23: #{tpu_custom_call.1} parent=0 // pred_check_branch
    %25 = sbr.rel (0) target = $region25
  $region24: #{tpu_custom_call.1} parent=0 // pred_region
    _
  $region25: #{tpu_custom_call.1} parent=0 // pred_fallthru
    _
  // Predicated region
  $region26: #{tpu_custom_call.1} parent=0 // pred_check
    _
  $region27: #{tpu_custom_call.1} parent=0 // pred_check_branch
    %27 = sbr.rel (0) target = $region29
  $region28: #{tpu_custom_call.1} parent=0 // pred_region
    _
  $region29: #{tpu_custom_call.1} parent=0 // pred_fallthru
    _
  %v28 = vld [vmem:[%s0] sm:$0xff]
  %v29 = vld [vmem:[%s1] sm:$0xff]
  %v30 = vld [vmem:[%s1 + $0x8] sm:$0x1]
  %v31 = vld [vmem:[%s2] sm:$0x1]
  %v33 = vperm.slane %v31, 0
  %vm35 = vcmask 72704
  %v37 = vsel %vm35, %v28, 0
  %vm39 = vcmask 1040384
  %v41 = vsel %vm39, %v30, 0
  %43 = vmatpush.msra.mxu0 0.0
  %44 = vmatpush.msra.mxu0 0.0
  %45 = vmatpush.msra.mxu0 0.0
  %46 = vmatpush.msra.mxu0 0.0
  %47 = vmatpush.msra.mxu0 0.0
  %48 = vmatpush.msra.mxu0 0.0
  %49 = vmatpush.msra.mxu0 0.0
  %50 = vmatpush.msra.mxu0 0.0
  %51 = vmatpush.msra.mxu0 0.0
  %52 = vmatpush.msra.mxu0 0.0
  %53 = vmatpush.msra.mxu0 0.0
  %54 = vmatpush.msra.mxu0 0.0
  %55 = vmatpush.msra.mxu0 0.0
  %56 = vmatpush.msra.mxu0 0.0
  %57 = vmatpush.msra.mxu0 %v41
  %58 = vmatpush.msra.mxu0 %v29
  %59 = vmatmul.f32.gmra.mxu0 %v37
  %v60 = vpop.f32.mrf.mxu0
  %v61 = vadd.f32 %v33, %v60
  %62 = vdwg.mxu0
  %v63 = vmax.f32 %v61, 0.0
  %v64 = vld [vmem:[%s3] sm:$0xff]
  %v65 = vld [vmem:[%s3 + $0x8] sm:$0xff]
  %v66 = vld [vmem:[%s3 + $0x10] sm:$0xff]
  %v67 = vld [vmem:[%s3 + $0x18] sm:$0xff]
  %v68 = vld [vmem:[%s3 + $0x20] sm:$0xff]
  %v69 = vld [vmem:[%s3 + $0x28] sm:$0xff]
  %v70 = vld [vmem:[%s3 + $0x30] sm:$0xff]
  %v71 = vld [vmem:[%s3 + $0x38] sm:$0xff]
  %v72 = vld [vmem:[%s3 + $0x40] sm:$0xff]
  %v73 = vld [vmem:[%s3 + $0x48] sm:$0xff]
  %v74 = vld [vmem:[%s3 + $0x50] sm:$0xff]
  %v75 = vld [vmem:[%s3 + $0x58] sm:$0xff]
  %v76 = vld [vmem:[%s3 + $0x60] sm:$0xff]
  %v77 = vld [vmem:[%s3 + $0x68] sm:$0xff]
  %v78 = vld [vmem:[%s3 + $0x70] sm:$0xff]
  %v79 = vld [vmem:[%s3 + $0x78] sm:$0xff]
  %v80 = vld [vmem:[%s4] sm:$0x1]
  %v82 = vperm.slane %v80, 0
  %84 = vmatpush.msra.mxu0 %v79
  %85 = vmatpush.msra.mxu0 %v78
  %86 = vmatpush.msra.mxu0 %v77
  %87 = vmatpush.msra.mxu0 %v76
  %88 = vmatpush.msra.mxu0 %v75
  %89 = vmatpush.msra.mxu0 %v74
  %90 = vmatpush.msra.mxu0 %v73
  %91 = vmatpush.msra.mxu0 %v72
  %92 = vmatpush.msra.mxu0 %v71
  %93 = vmatpush.msra.mxu0 %v70
  %94 = vmatpush.msra.mxu0 %v69
  %95 = vmatpush.msra.mxu0 %v68
  %96 = vmatpush.msra.mxu0 %v67
  %97 = vmatpush.msra.mxu0 %v66
  %98 = vmatpush.msra.mxu0 %v65
  %99 = vmatpush.msra.mxu0 %v64
  %100 = vmatmul.f32.gmra.mxu0 %v63
  %v101 = vpop.f32.mrf.mxu0
  %v102 = vadd.f32 %v82, %v101
  %103 = vdwg.mxu0
  %v104 = vmax.f32 %v102, 0.0
  %v105 = vld [vmem:[%s5] sm:$0x1]
  %v107 = vperm.slane %v105, 0
  %v109 = vmul.f32 %v104, %v107
  %vm110 = vcmask 261120
  %v111 = vsel %vm110, %v109, 0.0
  %112 = vadd.xlane.f32.xlu0 %v111
  %v113 = vpop.xlane.xlu0 %112
  %v114 = vld [vmem:[#allocation2] sm:$0x1]
  %v116 = vperm.slane %v114, 0
  %v118 = vadd.f32 %v113, %v116
  %v119 = vsub.f32 0.0, %v118
  %v120 = vmul.f32 %v119, 1.442695
  %v121 = vpow.pop %v120
  %v122 = vadd.f32 %v121, 1.0
  %v123 = vrcp.pop %v122
  %v124 = vmul.f32 %v122, %v123
  %v125 = vsub.f32 1.0, %v124
  %v126 = vmul.f32 %v123, %v125
  %v127 = vadd.f32 %v123, %v126
  %vm128 = vweird.f32 %v122
  %vm129 = vweird.f32 %v123
  %vm130 = vmor %vm128, %vm129
  %v131 = vsel %vm130, %v123, %v127
  %v132 = vand.u32 2147483647, %v122
  %vm133 = vcmp.eq.f32.partialorder %v132, 8.507059e+37
  %v134 = vand.u32 %v122, 2147483648
  %v135 = vor.u32 1.1754944e-38, %v134
  %v136 = vsel %vm133, %v135, %v131
  %v137 = vmul.f32 1.0, %v136
  %vm138 = vcmask 7168
  %139 = vst.msk [vmem:[%s7] sm:$0xff] %vm138, %v137
  // Predicated region
  $region30: #{tpu_custom_call.1} parent=0 // pred_check
    _
  $region31: #{tpu_custom_call.1} parent=0 // pred_check_branch
    %141 = sbr.rel (0) target = $region33
  $region32: #{tpu_custom_call.1} parent=0 // pred_region
    _
  $region33: #{tpu_custom_call.1} parent=0 // pred_fallthru
    _
  // Predicated region
  $region34: #{tpu_custom_call.1} parent=0 // pred_check
    _
  $region35: #{tpu_custom_call.1} parent=0 // pred_check_branch
    %143 = sbr.rel (0) target = $region37
  $region36: #{tpu_custom_call.1} parent=0 // pred_region
    _
  $region37: #{tpu_custom_call.1} parent=0 // pred_fallthru
    _

</llo_original>
